<compile_context>
chip_gen: v6e
topology: v6e:2x2x1
jax: 0.10.0
libtpu: 0.0.40
codegen_flags: <defaults>
</compile_context>

<pallas_src>
import functools

import jax
import jax.numpy as jnp
from jax.experimental import pallas as pl
from jax.experimental.pallas import tpu as pltpu

_LANES = 128
_SUBLANES = 8


def _acp_kernel(x_ref, o_ref, max_sc, sum_sc, *, hw, tk, col_tail):
    """Fold one (TM, TK) input block into running (TM, 128) max/sum partials."""
    k = pl.program_id(1)

    @pl.when(k == 0)
    def _init():
        max_sc[...] = jnp.full_like(max_sc, -jnp.inf)
        sum_sc[...] = jnp.zeros_like(sum_sc)

    x = x_ref[...].astype(jnp.float32)  # (TM, TK); accumulate in f32

    if col_tail:
        # Ragged HW edge: out-of-bounds lanes hold undefined data; neutralize
        # for both reductions (trace-time decision, emitted only when needed).
        col = k * tk + jax.lax.broadcasted_iota(jnp.int32, x.shape, 1)
        in_bounds = col < hw
        x_max = jnp.where(in_bounds, x, -jnp.inf)
        x_sum = jnp.where(in_bounds, x, 0.0)
    else:
        x_max = x
        x_sum = x

    # Elementwise (VPU) fold into (TM, 128) partials; no per-block XLU reduce.
    m = max_sc[...]
    s = sum_sc[...]
    for j in range(tk // _LANES):
        lo = j * _LANES
        hi = lo + _LANES
        m = jnp.maximum(m, x_max[:, lo:hi])
        s = s + x_sum[:, lo:hi]
    max_sc[...] = m
    sum_sc[...] = s

    @pl.when(k == pl.num_programs(1) - 1)
    def _finalize():
        row_max = jnp.max(max_sc[...], axis=-1)                  # (TM,)
        row_mean = jnp.sum(sum_sc[...], axis=-1) * (1.0 / hw)    # (TM,)
        o_ref[0:1, :] = row_max[None, :].astype(o_ref.dtype)
        o_ref[1:2, :] = row_mean[None, :].astype(o_ref.dtype)


def _round_up(a, b):
    return (a + b - 1) // b * b


def adaptive_concat_pool2d(x, *, tk_cap=2048, block_bytes=2 << 20):
    """x: (N, C, H, W) -> (N, 2*C, 1, 1); channel order [max | avg]."""
    N, C, H, W = x.shape
    M = N * C
    HW = H * W

    # Column (reduction) tile: multiple of 128 lanes, capped to bound VMEM.
    TK = min(tk_cap, _round_up(HW, _LANES))

    # Row tile: multiple of 128 (lane-dense output block) sized so an input
    # block is ~block_bytes, unless one block covers every row.
    itemsize = jnp.dtype(x.dtype).itemsize
    rows_budget = max(_LANES, block_bytes // (TK * itemsize))
    tm_cap = max(_LANES, min(1024, (rows_budget // _LANES) * _LANES))
    M8 = _round_up(M, _SUBLANES)
    TM = M8 if M8 <= tm_cap else tm_cap

    n_i = -(-M // TM)      # row blocks (ragged edge handled by Pallas)
    n_k = -(-HW // TK)     # reduction blocks (ragged edge masked in-kernel)
    M_out = n_i * TM       # lane-dense output width; extra columns sliced off

    x_flat = x.reshape(M, HW)  # free: NCHW is contiguous over (H, W)

    kernel = functools.partial(
        _acp_kernel, hw=HW, tk=TK, col_tail=(HW % TK != 0)
    )

    out = pl.pallas_call(
        kernel,
        out_shape=jax.ShapeDtypeStruct((2, M_out), x.dtype),
        grid_spec=pltpu.PrefetchScalarGridSpec(
            num_scalar_prefetch=0,
            grid=(n_i, n_k),                  # rows parallel, HW reduction last
            in_specs=[pl.BlockSpec((TM, TK), lambda i, k: (i, k))],
            out_specs=pl.BlockSpec((2, TM), lambda i, k: (0, i)),
            scratch_shapes=[
                pltpu.VMEM((TM, _LANES), jnp.float32),   # running max
                pltpu.VMEM((TM, _LANES), jnp.float32),   # running sum
            ],
        ),
        compiler_params=pltpu.CompilerParams(
            dimension_semantics=("parallel", "arbitrary"),
        ),
    )(x_flat)

    mx = out[0, :M].reshape(N, C, 1, 1)
    av = out[1, :M].reshape(N, C, 1, 1)
    return jnp.concatenate([mx, av], axis=1)  # PyTorch order: [max | avg]


def _reference(x):
    ref_max = jnp.max(x, axis=(2, 3), keepdims=True)
    ref_avg = jnp.mean(x, axis=(2, 3), keepdims=True)
    return jnp.concatenate([ref_max, ref_avg], axis=1)


if __name__ == "__main__":
    k1, k2 = jax.random.split(jax.random.PRNGKey(0))

    # Aligned case (HW multiple of 128, rows multiple of 8).
    x1 = jax.random.normal(k1, (2, 4, 16, 16), dtype=jnp.float32)
    out1 = jax.block_until_ready(adaptive_concat_pool2d(x1))
    assert out1.shape == (2, 8, 1, 1), out1.shape
    assert jnp.allclose(out1, _reference(x1), atol=1e-5, rtol=1e-5), "aligned mismatch"

    # Ragged case (HW = 49): exercises the in-kernel column-tail masking path.
    x2 = jax.random.normal(k2, (2, 4, 7, 7), dtype=jnp.float32)
    out2 = jax.block_until_ready(adaptive_concat_pool2d(x2))
    assert out2.shape == (2, 8, 1, 1), out2.shape
    assert jnp.allclose(out2, _reference(x2), atol=1e-5, rtol=1e-5), "ragged mismatch"

    print("KERNEL_OK")
</pallas_src>

<mosaic_0001>
module attributes {stable_mosaic.version = 11 : i64} {
  func.func @_acp_kernel(%arg0: i32, %arg1: i32, %arg2: memref<8x256xf32, #tpu.memory_space<vmem>>, %arg3: memref<2x8xf32, #tpu.memory_space<vmem>>, %arg4: memref<8x128xf32, #tpu.memory_space<vmem>>, %arg5: memref<8x128xf32, #tpu.memory_space<vmem>>) attributes {dimension_semantics = [#tpu.dimension_semantics<parallel>, #tpu.dimension_semantics<arbitrary>], iteration_bounds = array<i64: 1, 1>, scalar_prefetch = 0 : i64, scratch_operands = 2 : i64, tpu.core_type = #tpu.core_type<tc>, window_params = [{transform_indices = @transform_0, window_bounds = array<i64: 8, 256>}, {transform_indices = @transform_1, window_bounds = array<i64: 2, 8>}]} {
    %c0_i32 = arith.constant 0 : i32
    %0 = arith.cmpi eq, %arg1, %c0_i32 : i32
    %1 = arith.extui %0 : i1 to i32
    %c0_i32_0 = arith.constant 0 : i32
    %2 = arith.cmpi ne, %1, %c0_i32_0 : i32
    scf.if %2 {
      %cst = arith.constant 0xFF800000 : f32
      %19 = vector.broadcast %cst : f32 to vector<8x128xf32>
      %c0_12 = arith.constant 0 : index
      %c0_13 = arith.constant 0 : index
      %20 = vector.load %arg4[%c0_12, %c0_13] : memref<8x128xf32, #tpu.memory_space<vmem>>, vector<8x128xf32>
      tpu.vector_store %arg4[%c0_12, %c0_13], %19 {strides = array<i32>} : memref<8x128xf32, #tpu.memory_space<vmem>>, vector<8x128xf32>,
      %cst_14 = arith.constant 0.000000e+00 : f32
      %21 = vector.broadcast %cst_14 : f32 to vector<8x128xf32>
      %c0_15 = arith.constant 0 : index
      %c0_16 = arith.constant 0 : index
      %22 = vector.load %arg5[%c0_15, %c0_16] : memref<8x128xf32, #tpu.memory_space<vmem>>, vector<8x128xf32>
      tpu.vector_store %arg5[%c0_15, %c0_16], %21 {strides = array<i32>} : memref<8x128xf32, #tpu.memory_space<vmem>>, vector<8x128xf32>,
    } else {
    }
    %c0 = arith.constant 0 : index
    %c0_1 = arith.constant 0 : index
    %3 = vector.load %arg2[%c0, %c0_1] : memref<8x256xf32, #tpu.memory_space<vmem>>, vector<8x256xf32>
    %c0_2 = arith.constant 0 : index
    %c0_3 = arith.constant 0 : index
    %4 = vector.load %arg4[%c0_2, %c0_3] : memref<8x128xf32, #tpu.memory_space<vmem>>, vector<8x128xf32>
    %c0_4 = arith.constant 0 : index
    %c0_5 = arith.constant 0 : index
    %5 = vector.load %arg5[%c0_4, %c0_5] : memref<8x128xf32, #tpu.memory_space<vmem>>, vector<8x128xf32>
    %6 = vector.extract_strided_slice %3 {offsets = [0, 0], sizes = [8, 128], strides = [1, 1]} : vector<8x256xf32> to vector<8x128xf32>
    %7 = arith.maximumf %4, %6 : vector<8x128xf32>
    %8 = vector.extract_strided_slice %3 {offsets = [0, 0], sizes = [8, 128], strides = [1, 1]} : vector<8x256xf32> to vector<8x128xf32>
    %9 = arith.addf %5, %8 : vector<8x128xf32>
    %10 = vector.extract_strided_slice %3 {offsets = [0, 128], sizes = [8, 128], strides = [1, 1]} : vector<8x256xf32> to vector<8x128xf32>
    %11 = arith.maximumf %7, %10 : vector<8x128xf32>
    %12 = vector.extract_strided_slice %3 {offsets = [0, 128], sizes = [8, 128], strides = [1, 1]} : vector<8x256xf32> to vector<8x128xf32>
    %13 = arith.addf %9, %12 : vector<8x128xf32>
    %c0_6 = arith.constant 0 : index
    %c0_7 = arith.constant 0 : index
    %14 = vector.load %arg4[%c0_6, %c0_7] : memref<8x128xf32, #tpu.memory_space<vmem>>, vector<8x128xf32>
    tpu.vector_store %arg4[%c0_6, %c0_7], %11 {strides = array<i32>} : memref<8x128xf32, #tpu.memory_space<vmem>>, vector<8x128xf32>,
    %c0_8 = arith.constant 0 : index
    %c0_9 = arith.constant 0 : index
    %15 = vector.load %arg5[%c0_8, %c0_9] : memref<8x128xf32, #tpu.memory_space<vmem>>, vector<8x128xf32>
    tpu.vector_store %arg5[%c0_8, %c0_9], %13 {strides = array<i32>} : memref<8x128xf32, #tpu.memory_space<vmem>>, vector<8x128xf32>,
    %c0_i32_10 = arith.constant 0 : i32
    %16 = arith.cmpi eq, %arg1, %c0_i32_10 : i32
    %17 = arith.extui %16 : i1 to i32
    %c0_i32_11 = arith.constant 0 : i32
    %18 = arith.cmpi ne, %17, %c0_i32_11 : i32
    scf.if %18 {
      %c0_12 = arith.constant 0 : index
      %c0_13 = arith.constant 0 : index
      %19 = vector.load %arg4[%c0_12, %c0_13] : memref<8x128xf32, #tpu.memory_space<vmem>>, vector<8x128xf32>
      %cst = arith.constant dense<0xFF800000> : vector<8xf32>
      %20 = vector.multi_reduction <maximumf>, %19, %cst [1] : vector<8x128xf32> to vector<8xf32>
      %c0_14 = arith.constant 0 : index
      %c0_15 = arith.constant 0 : index
      %21 = vector.load %arg5[%c0_14, %c0_15] : memref<8x128xf32, #tpu.memory_space<vmem>>, vector<8x128xf32>
      %cst_16 = arith.constant dense<0.000000e+00> : vector<8xf32>
      %22 = vector.multi_reduction <add>, %21, %cst_16 [1] : vector<8x128xf32> to vector<8xf32>
      %cst_17 = arith.constant 3.906250e-03 : f32
      %23 = vector.broadcast %cst_17 : f32 to vector<8xf32>
      %24 = arith.mulf %22, %23 : vector<8xf32>
      %25 = vector.shape_cast %20 : vector<8xf32> to vector<1x8xf32>
      %c0_18 = arith.constant 0 : index
      %c0_19 = arith.constant 0 : index
      %26 = vector.load %arg3[%c0_18, %c0_19] : memref<2x8xf32, #tpu.memory_space<vmem>>, vector<1x8xf32>
      tpu.vector_store %arg3[%c0_18, %c0_19], %25 {strides = array<i32>} : memref<2x8xf32, #tpu.memory_space<vmem>>, vector<1x8xf32>,
      %27 = vector.shape_cast %24 : vector<8xf32> to vector<1x8xf32>
      %c1 = arith.constant 1 : index
      %c0_20 = arith.constant 0 : index
      %28 = vector.load %arg3[%c1, %c0_20] : memref<2x8xf32, #tpu.memory_space<vmem>>, vector<1x8xf32>
      tpu.vector_store %arg3[%c1, %c0_20], %27 {strides = array<i32>} : memref<2x8xf32, #tpu.memory_space<vmem>>, vector<1x8xf32>,
    } else {
    }
    return
  }
  func.func @transform_0(%arg0: i32, %arg1: i32) -> (i32, i32) {
    %c0_i32 = arith.constant 0 : i32
    return %arg0, %arg1 : i32, i32
  }
  func.func @transform_1(%arg0: i32, %arg1: i32) -> (i32, i32) {
    %c0_i32 = arith.constant 0 : i32
    %c0_i32_0 = arith.constant 0 : i32
    return %c0_i32, %arg0 : i32, i32
  }
}

</mosaic_0001>

<llo_original>
// kernel: tpu_custom_call.1
$region0: #{tpu_custom_call.1}
  #allocation0 [shape = 'u32[]', space=smem, size = 0x4, offset = 0x4, fixed_abs, tag = 'smem constant byte address 0x4 - core index']
  #allocation1 [shape = 'u32[144,128]{1,0:T(1,128)}', space=vmem, size = 0x12000, scoped, tag = 'internal scratch']
  #allocation2 [shape = 'f32[8,128]{1,0:T(8,128)}', space=vmem, size = 0x1000, scoped, tag = 'scratch operand']
  #allocation3 [shape = 'f32[8,128]{1,0:T(8,128)}', space=vmem, size = 0x1000, scoped, tag = 'scratch operand']
  %s0 = inlined_call_operand.hbm [shape: f32[8,256], index: 0, kind: input, shape index: {}]
  %s1 = inlined_call_operand.hbm [shape: f32[2,8], index: 1, kind: output, shape index: {}]
  %s2 = sld [smem:[#allocation0]]
  $region26: #{tpu_custom_call.1} parent=0
    _
  %s4 = ssub.s32 1, %s2
  %s5 = scalar_select 0, %s4, %s2
  $region1: #{tpu_custom_call.1} parent=0
    #allocation4 [shape = 'u8[8192]{0}', space=vmem, size = 0x2000, scoped, tag = 'input window, operand 0, single buffered']
    #allocation5 [shape = 's32[1]{0}', space=sflag, size = 0x4, scoped, tag = 'scoped memory for tpu_custom_call.1']
    #allocation6 [shape = 's32[1]{0}', space=sflag, size = 0x4, scoped, tag = 'scoped memory for tpu_custom_call.1']
    #allocation7 [shape = 'u8[1024]{0}', space=vmem, size = 0x400, scoped, tag = 'output window, operand 0, single buffered']
    %6 = vsyncpa [#allocation5], 0
    %7 = vsyncpa [#allocation6], 0
    // Predicated region
    $region2: #{tpu_custom_call.1} parent=1 // pred_check
      _
    $region3: #{tpu_custom_call.1} parent=1 // pred_check_branch
      %9 = sbr.rel (0) target = $region5
    $region4: #{tpu_custom_call.1} parent=1 // pred_region
      %s11 = ssub.s32 256, 256
      %12 = vsyncadd [#allocation5], %s11
      %s14 = sshll.u32 [#allocation4], 4
      %s15 = int_to_ptr.vmem [resolvable:$true] %s14
      %17 = dma.hbm_to_vmem [thread:$0]  %s0, 256, %s15, [#allocation5]
    $region5: #{tpu_custom_call.1} parent=1 // pred_fallthru
      _
    // Predicated region
    $region6: #{tpu_custom_call.1} parent=1 // pred_check
      _
    $region7: #{tpu_custom_call.1} parent=1 // pred_check_branch
      %19 = sbr.rel (0) target = $region9
    $region8: #{tpu_custom_call.1} parent=1 // pred_region
      %20 = dma.done [#allocation5], 256
    $region9: #{tpu_custom_call.1} parent=1 // pred_fallthru
      _
    %p21 = scmp.eq.s32.totalorder 0, 0
    // Predicated region
    $region10: #{tpu_custom_call.1} parent=1 // pred_check
      %p22 = pneg %p21
    $region11: #{tpu_custom_call.1} parent=1 // pred_check_branch
      %24 = sbr.rel (%p22) target = $region13
    $region12: #{tpu_custom_call.1} parent=1 // pred_region
      %25 = vst [vmem:[#allocation2] sm:$0xff] -inf
      %26 = vst [vmem:[#allocation3] sm:$0xff] 0.0
    $region13: #{tpu_custom_call.1} parent=1 // pred_fallthru
      _
    %v27 = vld [vmem:[#allocation4] sm:$0xff]
    %v28 = vld [vmem:[#allocation4 + $0x8] sm:$0xff]
    %v29 = vld [vmem:[#allocation2] sm:$0xff]
    %v30 = vld [vmem:[#allocation3] sm:$0xff]
    %v31 = vmax.f32 %v29, %v27
    %v32 = vadd.f32 %v30, %v27
    %v33 = vmax.f32 %v31, %v28
    %v34 = vadd.f32 %v32, %v28
    %35 = vst [vmem:[#allocation2] sm:$0xff] %v33
    %36 = vst [vmem:[#allocation3] sm:$0xff] %v34
    // Predicated region
    $region14: #{tpu_custom_call.1} parent=1 // pred_check
      %p37 = pneg %p21
    $region15: #{tpu_custom_call.1} parent=1 // pred_check_branch
      %39 = sbr.rel (%p37) target = $region17
    $region16: #{tpu_custom_call.1} parent=1 // pred_region
      %v40 = vld [vmem:[#allocation2] sm:$0xff]
      %41 = vmax.xlane.f32.xlu0 %v40
      %v42 = vpop.xlane.xlu0 %41
      %v43 = vld [vmem:[#allocation3] sm:$0xff]
      %44 = vadd.xlane.f32.xlu0 %v43
      %v45 = vpop.xlane.xlu0 %44
      %v46 = vmul.f32 %v45, 0.00390625
      %v48 = vlaneseq
      %v49 = vand.u32 %v48, 127
      %v50 = vlaneseq
      %v51 = vshrl.u32 %v50, 7
      %v52 = vsub.s32 %v49, %v51
      %v53 = vrot.slane %v42, %v52
      %vm55 = vcmask 57344
      %56 = vst.msk [vmem:[#allocation7] sm:$0x1] %vm55, %v53
      %v58 = vlaneseq
      %v59 = vshrl.u32 %v58, 7
      %v60 = vsub.s32 %v49, %v59
      %v61 = vrot.slane %v46, %v60
      %63 = vst.msk [vmem:[#allocation7 + $0x1] sm:$0x1] %vm55, %v61
    $region17: #{tpu_custom_call.1} parent=1 // pred_fallthru
      _
    // Predicated region
    $region18: #{tpu_custom_call.1} parent=1 // pred_check
      _
    $region19: #{tpu_custom_call.1} parent=1 // pred_check_branch
      %65 = sbr.rel (0) target = $region21
    $region20: #{tpu_custom_call.1} parent=1 // pred_region
      %s67 = ssub.s32 32, 32
      %68 = vsyncadd [#allocation6], %s67
      %s70 = sshll.u32 [#allocation7], 4
      %s71 = int_to_ptr.vmem [resolvable:$true] %s70
      %73 = dma.vmem_to_hbm [thread:$0]  %s71, 32, %s1, [#allocation6]
    $region21: #{tpu_custom_call.1} parent=1 // pred_fallthru
      _
    // Predicated region
    $region22: #{tpu_custom_call.1} parent=1 // pred_check
      _
    $region23: #{tpu_custom_call.1} parent=1 // pred_check_branch
      %75 = sbr.rel (0) target = $region25
    $region24: #{tpu_custom_call.1} parent=1 // pred_region
      %76 = dma.done [#allocation6], 32
    $region25: #{tpu_custom_call.1} parent=1 // pred_fallthru
      _
    %77 = vsyncpa [#allocation5], 1
    %78 = vsyncpa [#allocation6], 1

</llo_original>
